<compile_context>
chip_gen: v6e
topology: v6e:2x2x1
jax: 0.10.0
libtpu: 0.0.40
codegen_flags: <defaults>
</compile_context>

<pallas_src>
import functools

import jax
import jax.numpy as jnp
from jax.experimental import pallas as pl
from jax.experimental.pallas import tpu as pltpu


def _mlp_kernel(x_ref, w1_ref, b1_ref, w2_ref, b2_ref, w3_ref, b3_ref, o_ref,
                *, compute_dtype):
    # fc1 + ReLU  (bf16 MXU inputs, f32 accumulation).  Weights arrive already
    # in compute_dtype (cast once in the wrapper), only x is cast per step.
    x = x_ref[...].astype(compute_dtype)
    h1 = jnp.dot(x, w1_ref[...], preferred_element_type=jnp.float32)
    h1 = jnp.maximum(h1 + b1_ref[...], 0.0)

    # fc2 + ReLU
    h2 = jnp.dot(h1.astype(compute_dtype), w2_ref[...],
                 preferred_element_type=jnp.float32)
    h2 = jnp.maximum(h2 + b2_ref[...], 0.0)

    # fc3 (narrow: only the real output lanes, no 128-lane padding)
    logits = jnp.dot(h2.astype(compute_dtype), w3_ref[...],
                     preferred_element_type=jnp.float32)
    logits = logits + b3_ref[...]

    # Numerically stable softmax over the last axis (f32 throughout).
    m = jnp.max(logits, axis=-1, keepdims=True)
    e = jnp.exp(logits - m)
    denom = jnp.sum(e, axis=-1, keepdims=True)
    probs = e * pl.reciprocal(denom, approx=True)

    o_ref[...] = probs.astype(o_ref.dtype)


def _choose_batch_tile(B, block_rows):
    """Pick a batch tile: multiple of 16 rows, >=2 grid steps when possible."""
    if B <= 16:
        return B                     # full dim -> always a legal block shape
    # Cap so the grid has at least 2 steps (v7x has 2 TensorCores to feed).
    half = (B + 1) // 2
    half_up = ((half + 15) // 16) * 16
    tb = min(block_rows, half_up, B)
    tb = max(16, (tb // 16) * 16)    # bf16 packs 16 rows per sublane vreg
    return tb


@functools.partial(jax.jit, static_argnames=("block_rows", "compute_dtype"))
def neural_net_forward(x, w1, b1, w2, b2, w3, b3, *, block_rows=4096,
                       compute_dtype=jnp.bfloat16):
    B, in_features = x.shape
    h1_size = w1.shape[1]
    h2_size = w2.shape[1]
    out_size = w3.shape[1]

    # One-time bf16 cast of the (VMEM-resident) weights; biases stay f32 so the
    # f32 bias-add / softmax path keeps full accuracy.
    w1c = w1.astype(compute_dtype)
    w2c = w2.astype(compute_dtype)
    w3c = w3.astype(compute_dtype)

    # ---- Batch tile selection (see _choose_batch_tile). ----
    tb = _choose_batch_tile(B, block_rows)
    grid = (pl.cdiv(B, tb),)

    # Weights/biases: whole-array blocks, constant index map -> VMEM-resident
    # across all grid steps (no re-DMA).
    def const_spec(a):
        return pl.BlockSpec(a.shape, lambda i: (0, 0))

    flops = 2 * B * (in_features * h1_size + h1_size * h2_size
                     + h2_size * out_size)
    bytes_accessed = (4 * (x.size + b1.size + b2.size + b3.size
                           + B * out_size)
                      + 2 * (w1c.size + w2c.size + w3c.size))
    cost = pl.CostEstimate(flops=flops,
                           transcendentals=B * out_size,
                           bytes_accessed=bytes_accessed)

    out = pl.pallas_call(
        functools.partial(_mlp_kernel, compute_dtype=compute_dtype),
        out_shape=jax.ShapeDtypeStruct((B, out_size), jnp.float32),
        grid=grid,
        in_specs=[
            pl.BlockSpec((tb, in_features), lambda i: (i, 0)),   # x: batch-tiled
            const_spec(w1c), const_spec(b1),
            const_spec(w2c), const_spec(b2),
            const_spec(w3c), const_spec(b3),
        ],
        out_specs=pl.BlockSpec((tb, out_size), lambda i: (i, 0)),
        compiler_params=pltpu.CompilerParams(
            dimension_semantics=("parallel",),
            vmem_limit_bytes=32 * 1024 * 1024,   # safe on v5e/v6e/v7x
        ),
        cost_estimate=cost,
    )(x, w1c, b1, w2c, b2, w3c, b3)

    # .view(B, -1) of the original module is a no-op for 2-D output.
    return out


def init_params(key, input_size, hidden_size1, hidden_size2, output_size):
    """Deterministic init mirroring nn.Linear shapes (stored transposed)."""
    ks = jax.random.split(key, 6)

    def linear(kw, kb, fan_in, fan_out):
        bound = 1.0 / jnp.sqrt(fan_in)
        w = jax.random.uniform(kw, (fan_in, fan_out), jnp.float32, -bound, bound)
        b = jax.random.uniform(kb, (1, fan_out), jnp.float32, -bound, bound)
        return w, b

    w1, b1 = linear(ks[0], ks[1], input_size, hidden_size1)
    w2, b2 = linear(ks[2], ks[3], hidden_size1, hidden_size2)
    w3, b3 = linear(ks[4], ks[5], hidden_size2, output_size)
    return w1, b1, w2, b2, w3, b3


if __name__ == "__main__":
    input_size, hidden_size1, hidden_size2, output_size = 32, 64, 32, 16
    batch = 8

    key = jax.random.PRNGKey(0)
    kx, kp = jax.random.split(key)
    x = jax.random.normal(kx, (batch, input_size), jnp.float32)
    params = init_params(kp, input_size, hidden_size1, hidden_size2, output_size)

    out = neural_net_forward(x, *params)
    out = jax.block_until_ready(out)

    # Reference check in plain JAX (f32; kernel uses bf16 MXU inputs with f32
    # accumulation and an approx reciprocal, so compare with relaxed tolerance).
    w1, b1, w2, b2, w3, b3 = params
    h1 = jnp.maximum(x @ w1 + b1, 0.0)
    h2 = jnp.maximum(h1 @ w2 + b2, 0.0)
    ref = jax.nn.softmax(h2 @ w3 + b3, axis=-1).reshape(batch, -1)

    assert out.shape == (batch, output_size)
    assert bool(jnp.all(jnp.isfinite(out)))
    assert jnp.allclose(out, ref, atol=2e-2, rtol=2e-2)

    # Quick sanity at a batch that exercises multiple grid steps / partial tile.
    big_B = 100
    xb = jax.random.normal(jax.random.PRNGKey(1), (big_B, input_size), jnp.float32)
    outb = jax.block_until_ready(neural_net_forward(xb, *params))
    h1b = jnp.maximum(xb @ w1 + b1, 0.0)
    h2b = jnp.maximum(h1b @ w2 + b2, 0.0)
    refb = jax.nn.softmax(h2b @ w3 + b3, axis=-1)
    assert outb.shape == (big_B, output_size)
    assert jnp.allclose(outb, refb, atol=2e-2, rtol=2e-2)

    print("KERNEL_OK")
</pallas_src>

<mosaic_0001>
module attributes {stable_mosaic.version = 11 : i64} {
  func.func @_mlp_kernel(%arg0: i32, %arg1: memref<8x32xf32, #tpu.memory_space<vmem>>, %arg2: memref<32x64xbf16, #tpu.memory_space<vmem>>, %arg3: memref<1x64xf32, #tpu.memory_space<vmem>>, %arg4: memref<64x32xbf16, #tpu.memory_space<vmem>>, %arg5: memref<1x32xf32, #tpu.memory_space<vmem>>, %arg6: memref<32x16xbf16, #tpu.memory_space<vmem>>, %arg7: memref<1x16xf32, #tpu.memory_space<vmem>>, %arg8: memref<8x16xf32, #tpu.memory_space<vmem>>) attributes {dimension_semantics = [#tpu.dimension_semantics<parallel>], iteration_bounds = array<i64: 1>, scalar_prefetch = 0 : i64, scratch_operands = 0 : i64, tpu.core_type = #tpu.core_type<tc>, window_params = [{transform_indices = @transform_0, window_bounds = array<i64: 8, 32>}, {pipeline_mode = #tpu.pipeline_mode<synchronous>, transform_indices = @transform_1, window_bounds = array<i64: 32, 64>}, {pipeline_mode = #tpu.pipeline_mode<synchronous>, transform_indices = @transform_2, window_bounds = array<i64: 1, 64>}, {pipeline_mode = #tpu.pipeline_mode<synchronous>, transform_indices = @transform_3, window_bounds = array<i64: 64, 32>}, {pipeline_mode = #tpu.pipeline_mode<synchronous>, transform_indices = @transform_4, window_bounds = array<i64: 1, 32>}, {pipeline_mode = #tpu.pipeline_mode<synchronous>, transform_indices = @transform_5, window_bounds = array<i64: 32, 16>}, {pipeline_mode = #tpu.pipeline_mode<synchronous>, transform_indices = @transform_6, window_bounds = array<i64: 1, 16>}, {transform_indices = @transform_7, window_bounds = array<i64: 8, 16>}]} {
    %c0 = arith.constant 0 : index
    %c0_0 = arith.constant 0 : index
    %0 = vector.load %arg1[%c0, %c0_0] : memref<8x32xf32, #tpu.memory_space<vmem>>, vector<8x32xf32>
    %1 = arith.truncf %0 : vector<8x32xf32> to vector<8x32xbf16>
    %c0_1 = arith.constant 0 : index
    %c0_2 = arith.constant 0 : index
    %2 = vector.load %arg2[%c0_1, %c0_2] : memref<32x64xbf16, #tpu.memory_space<vmem>>, vector<32x64xbf16>
    %cst = arith.constant dense<0.000000e+00> : vector<8x64xf32>
    %3 = tpu.matmul %1, %2, %cst {dimension_numbers = #tpu.dot_dimension_numbers<[1], [0], [0], [1], [0, 0, 1, 1], [], []>} : vector<8x32xbf16>, vector<32x64xbf16>, vector<8x64xf32> -> vector<8x64xf32>
    %c0_3 = arith.constant 0 : index
    %c0_4 = arith.constant 0 : index
    %4 = vector.load %arg3[%c0_3, %c0_4] : memref<1x64xf32, #tpu.memory_space<vmem>>, vector<1x64xf32>
    %5 = vector.broadcast %4 : vector<1x64xf32> to vector<8x64xf32>
    %6 = arith.addf %3, %5 : vector<8x64xf32>
    %cst_5 = arith.constant 0.000000e+00 : f32
    %7 = vector.broadcast %cst_5 : f32 to vector<8x64xf32>
    %8 = arith.maximumf %6, %7 : vector<8x64xf32>
    %9 = arith.truncf %8 : vector<8x64xf32> to vector<8x64xbf16>
    %c0_6 = arith.constant 0 : index
    %c0_7 = arith.constant 0 : index
    %10 = vector.load %arg4[%c0_6, %c0_7] : memref<64x32xbf16, #tpu.memory_space<vmem>>, vector<64x32xbf16>
    %cst_8 = arith.constant dense<0.000000e+00> : vector<8x32xf32>
    %11 = tpu.matmul %9, %10, %cst_8 {dimension_numbers = #tpu.dot_dimension_numbers<[1], [0], [0], [1], [0, 0, 1, 1], [], []>} : vector<8x64xbf16>, vector<64x32xbf16>, vector<8x32xf32> -> vector<8x32xf32>
    %c0_9 = arith.constant 0 : index
    %c0_10 = arith.constant 0 : index
    %12 = vector.load %arg5[%c0_9, %c0_10] : memref<1x32xf32, #tpu.memory_space<vmem>>, vector<1x32xf32>
    %13 = vector.broadcast %12 : vector<1x32xf32> to vector<8x32xf32>
    %14 = arith.addf %11, %13 : vector<8x32xf32>
    %cst_11 = arith.constant 0.000000e+00 : f32
    %15 = vector.broadcast %cst_11 : f32 to vector<8x32xf32>
    %16 = arith.maximumf %14, %15 : vector<8x32xf32>
    %17 = arith.truncf %16 : vector<8x32xf32> to vector<8x32xbf16>
    %c0_12 = arith.constant 0 : index
    %c0_13 = arith.constant 0 : index
    %18 = vector.load %arg6[%c0_12, %c0_13] : memref<32x16xbf16, #tpu.memory_space<vmem>>, vector<32x16xbf16>
    %cst_14 = arith.constant dense<0.000000e+00> : vector<8x16xf32>
    %19 = tpu.matmul %17, %18, %cst_14 {dimension_numbers = #tpu.dot_dimension_numbers<[1], [0], [0], [1], [0, 0, 1, 1], [], []>} : vector<8x32xbf16>, vector<32x16xbf16>, vector<8x16xf32> -> vector<8x16xf32>
    %c0_15 = arith.constant 0 : index
    %c0_16 = arith.constant 0 : index
    %20 = vector.load %arg7[%c0_15, %c0_16] : memref<1x16xf32, #tpu.memory_space<vmem>>, vector<1x16xf32>
    %21 = vector.broadcast %20 : vector<1x16xf32> to vector<8x16xf32>
    %22 = arith.addf %19, %21 : vector<8x16xf32>
    %cst_17 = arith.constant dense<0xFF800000> : vector<8xf32>
    %23 = vector.multi_reduction <maximumf>, %22, %cst_17 [1] : vector<8x16xf32> to vector<8xf32>
    %24 = vector.shape_cast %23 : vector<8xf32> to vector<8x1xf32>
    %25 = vector.broadcast %24 : vector<8x1xf32> to vector<8x16xf32>
    %26 = arith.subf %22, %25 : vector<8x16xf32>
    %27 = math.exp %26 : vector<8x16xf32>
    %cst_18 = arith.constant dense<0.000000e+00> : vector<8xf32>
    %28 = vector.multi_reduction <add>, %27, %cst_18 [1] : vector<8x16xf32> to vector<8xf32>
    %29 = vector.shape_cast %28 : vector<8xf32> to vector<8x1xf32>
    %30 = tpu.reciprocal %29 {approx = true} : vector<8x1xf32> -> vector<8x1xf32>
    %31 = vector.broadcast %30 : vector<8x1xf32> to vector<8x16xf32>
    %32 = arith.mulf %27, %31 : vector<8x16xf32>
    %c0_19 = arith.constant 0 : index
    %c0_20 = arith.constant 0 : index
    %33 = vector.load %arg8[%c0_19, %c0_20] : memref<8x16xf32, #tpu.memory_space<vmem>>, vector<8x16xf32>
    tpu.vector_store %arg8[%c0_19, %c0_20], %32 {strides = array<i32>} : memref<8x16xf32, #tpu.memory_space<vmem>>, vector<8x16xf32>,
    return
  }
  func.func @transform_0(%arg0: i32) -> (i32, i32) {
    %c0_i32 = arith.constant 0 : i32
    %c0_i32_0 = arith.constant 0 : i32
    return %arg0, %c0_i32 : i32, i32
  }
  func.func @transform_1(%arg0: i32) -> (i32, i32) {
    %c0_i32 = arith.constant 0 : i32
    %c0_i32_0 = arith.constant 0 : i32
    %c0_i32_1 = arith.constant 0 : i32
    return %c0_i32, %c0_i32_0 : i32, i32
  }
  func.func @transform_2(%arg0: i32) -> (i32, i32) {
    %c0_i32 = arith.constant 0 : i32
    %c0_i32_0 = arith.constant 0 : i32
    %c0_i32_1 = arith.constant 0 : i32
    return %c0_i32, %c0_i32_0 : i32, i32
  }
  func.func @transform_3(%arg0: i32) -> (i32, i32) {
    %c0_i32 = arith.constant 0 : i32
    %c0_i32_0 = arith.constant 0 : i32
    %c0_i32_1 = arith.constant 0 : i32
    return %c0_i32, %c0_i32_0 : i32, i32
  }
  func.func @transform_4(%arg0: i32) -> (i32, i32) {
    %c0_i32 = arith.constant 0 : i32
    %c0_i32_0 = arith.constant 0 : i32
    %c0_i32_1 = arith.constant 0 : i32
    return %c0_i32, %c0_i32_0 : i32, i32
  }
  func.func @transform_5(%arg0: i32) -> (i32, i32) {
    %c0_i32 = arith.constant 0 : i32
    %c0_i32_0 = arith.constant 0 : i32
    %c0_i32_1 = arith.constant 0 : i32
    return %c0_i32, %c0_i32_0 : i32, i32
  }
  func.func @transform_6(%arg0: i32) -> (i32, i32) {
    %c0_i32 = arith.constant 0 : i32
    %c0_i32_0 = arith.constant 0 : i32
    %c0_i32_1 = arith.constant 0 : i32
    return %c0_i32, %c0_i32_0 : i32, i32
  }
  func.func @transform_7(%arg0: i32) -> (i32, i32) {
    %c0_i32 = arith.constant 0 : i32
    %c0_i32_0 = arith.constant 0 : i32
    return %arg0, %c0_i32 : i32, i32
  }
}

</mosaic_0001>

<llo_original>
// kernel: neural_net_forward.1
$region0: #{neural_net_forward.1}
  #allocation0 [shape = 'u32[]', space=smem, size = 0x4, offset = 0x4, fixed_abs, tag = 'smem constant byte address 0x4 - core index']
  #allocation1 [shape = 'u32[144,128]{1,0:T(1,128)}', space=vmem, size = 0x12000, scoped, tag = 'internal scratch']
  %s0 = inlined_call_operand.vmem [shape: f32[8,32], index: 0, kind: input, shape index: {}]
  %s1 = inlined_call_operand.vmem [shape: bf16[32,64], index: 1, kind: input, shape index: {}]
  %s2 = inlined_call_operand.vmem [shape: f32[1,64], index: 2, kind: input, shape index: {}]
  %s3 = inlined_call_operand.vmem [shape: bf16[64,32], index: 3, kind: input, shape index: {}]
  %s4 = inlined_call_operand.vmem [shape: f32[1,32], index: 4, kind: input, shape index: {}]
  %s5 = inlined_call_operand.vmem [shape: bf16[32,16], index: 5, kind: input, shape index: {}]
  %s6 = inlined_call_operand.vmem [shape: f32[1,16], index: 6, kind: input, shape index: {}]
  %s7 = inlined_call_operand.hbm [shape: f32[8,16], index: 7, kind: output, shape index: {}]
  %s8 = sld [smem:[#allocation0]]
  $region38: #{neural_net_forward.1} parent=0
    _
  %s10 = ssub.s32 1, %s8
  %s11 = scalar_select 0, %s10, %s8
  $region1: #{neural_net_forward.1} parent=0
    #allocation2 [shape = 'u8[4096]{0}', space=vmem, size = 0x1000, scoped, tag = 'output window, operand 0, single buffered']
    #allocation3 [shape = 's32[1]{0}', space=sflag, size = 0x4, scoped, tag = 'scoped memory for neural_net_forward.1']
    %12 = vsyncpa [#allocation3], 0
    // Predicated region
    $region2: #{neural_net_forward.1} parent=1 // pred_check
      _
    $region3: #{neural_net_forward.1} parent=1 // pred_check_branch
      %14 = sbr.rel (0) target = $region5
    $region4: #{neural_net_forward.1} parent=1 // pred_region
      _
    $region5: #{neural_net_forward.1} parent=1 // pred_fallthru
      _
    // Predicated region
    $region6: #{neural_net_forward.1} parent=1 // pred_check
      _
    $region7: #{neural_net_forward.1} parent=1 // pred_check_branch
      %16 = sbr.rel (0) target = $region9
    $region8: #{neural_net_forward.1} parent=1 // pred_region
      _
    $region9: #{neural_net_forward.1} parent=1 // pred_fallthru
      _
    // Predicated region
    $region10: #{neural_net_forward.1} parent=1 // pred_check
      _
    $region11: #{neural_net_forward.1} parent=1 // pred_check_branch
      %18 = sbr.rel (0) target = $region13
    $region12: #{neural_net_forward.1} parent=1 // pred_region
      _
    $region13: #{neural_net_forward.1} parent=1 // pred_fallthru
      _
    // Predicated region
    $region14: #{neural_net_forward.1} parent=1 // pred_check
      _
    $region15: #{neural_net_forward.1} parent=1 // pred_check_branch
      %20 = sbr.rel (0) target = $region17
    $region16: #{neural_net_forward.1} parent=1 // pred_region
      _
    $region17: #{neural_net_forward.1} parent=1 // pred_fallthru
      _
    // Predicated region
    $region18: #{neural_net_forward.1} parent=1 // pred_check
      _
    $region19: #{neural_net_forward.1} parent=1 // pred_check_branch
      %22 = sbr.rel (0) target = $region21
    $region20: #{neural_net_forward.1} parent=1 // pred_region
      _
    $region21: #{neural_net_forward.1} parent=1 // pred_fallthru
      _
    // Predicated region
    $region22: #{neural_net_forward.1} parent=1 // pred_check
      _
    $region23: #{neural_net_forward.1} parent=1 // pred_check_branch
      %24 = sbr.rel (0) target = $region25
    $region24: #{neural_net_forward.1} parent=1 // pred_region
      _
    $region25: #{neural_net_forward.1} parent=1 // pred_fallthru
      _
    // Predicated region
    $region26: #{neural_net_forward.1} parent=1 // pred_check
      _
    $region27: #{neural_net_forward.1} parent=1 // pred_check_branch
      %26 = sbr.rel (0) target = $region29
    $region28: #{neural_net_forward.1} parent=1 // pred_region
      _
    $region29: #{neural_net_forward.1} parent=1 // pred_fallthru
      _
    %v28 = vld [vmem:[%s0] sm:$0xff]
    %v29 = vpack.c.bf16 %v28, %v28
    %v30 = vld [vmem:[%s1] sm:$0xf]
    %v31 = vld [vmem:[%s1 + $0x4] sm:$0xf]
    %v32 = vld [vmem:[%s1 + $0x8] sm:$0xf]
    %v33 = vld [vmem:[%s1 + $0xc] sm:$0xf]
    %v34 = vld [vmem:[%s2] sm:$0x1]
    %v36 = vlaneseq
    %v37 = vshrl.u32 %v36, 7
    %v38 = vsub.s32 0, %v37
    %v39 = vrot.slane %v34, %v38
    %v45 = vunpack.c.l.b16 %v30
    %v46 = vunpack.c.l.b16 %v31
    %v47 = vunpack.c.l.b16 %v32
    %v48 = vunpack.c.l.b16 %v33
    %v49 = vpack.c.b16 %v46, %v45
    %v50 = vpack.c.b16 %v48, %v47
    %vm53 = vcmask 261120
    %v55 = vsel %vm53, %v29, 0
    %57 = vmatprep.subr.bf16.mxu0 0
    %58 = vmatpush1.bf16.msra.mxu0 0
    %59 = vmatprep.subr.bf16.mxu0 0
    %60 = vmatpush1.bf16.msra.mxu0 0
    %61 = vmatprep.subr.bf16.mxu0 0
    %62 = vmatpush1.bf16.msra.mxu0 0
    %63 = vmatprep.subr.bf16.mxu0 0
    %64 = vmatpush1.bf16.msra.mxu0 0
    %65 = vmatprep.subr.bf16.mxu0 0
    %66 = vmatpush1.bf16.msra.mxu0 0
    %67 = vmatprep.subr.bf16.mxu0 0
    %68 = vmatpush1.bf16.msra.mxu0 0
    %69 = vmatprep.subr.bf16.mxu0 0
    %70 = vmatpush1.bf16.msra.mxu0 %v50
    %71 = vmatprep.subr.bf16.mxu0 0
    %72 = vmatpush1.bf16.msra.mxu0 %v49
    %73 = vmatprep.subr.bf16.mxu0 0
    %74 = vmatpush2.bf16.msra.mxu0 0
    %75 = vmatprep.subr.bf16.mxu0 0
    %76 = vmatpush2.bf16.msra.mxu0 0
    %77 = vmatprep.subr.bf16.mxu0 0
    %78 = vmatpush2.bf16.msra.mxu0 0
    %79 = vmatprep.subr.bf16.mxu0 0
    %80 = vmatpush2.bf16.msra.mxu0 0
    %81 = vmatprep.subr.bf16.mxu0 0
    %82 = vmatpush2.bf16.msra.mxu0 0
    %83 = vmatprep.subr.bf16.mxu0 0
    %84 = vmatpush2.bf16.msra.mxu0 0
    %85 = vmatprep.subr.bf16.mxu0 0
    %86 = vmatpush2.bf16.msra.mxu0 0
    %87 = vmatprep.subr.bf16.mxu0 0
    %88 = vmatpush2.bf16.msra.mxu0 0
    %89 = vmatprep.mubr.bf16.mxu0 0
    %90 = vmatmul.mubr.bf16.gmra.mxu0 %v55
    %v91 = vpop.f32.mrf.mxu0
    %v92 = vadd.f32 %v39, %v91
    %v93 = vpop.f32.mrf.mxu0
    %v94 = vpop.f32.mrf.mxu0
    %v95 = vpop.f32.mrf.mxu0
    %96 = vdwg.mxu0
    %v97 = vmax.f32 %v92, 0.0
    %v98 = vpack.c.bf16 %v97, %v97
    %v99 = vld [vmem:[%s3] sm:$0xf]
    %v100 = vld [vmem:[%s3 + $0x4] sm:$0xf]
    %v101 = vld [vmem:[%s3 + $0x8] sm:$0xf]
    %v102 = vld [vmem:[%s3 + $0xc] sm:$0xf]
    %v103 = vld [vmem:[%s3 + $0x10] sm:$0xf]
    %v104 = vld [vmem:[%s3 + $0x14] sm:$0xf]
    %v105 = vld [vmem:[%s3 + $0x18] sm:$0xf]
    %v106 = vld [vmem:[%s3 + $0x1c] sm:$0xf]
    %v107 = vld [vmem:[%s4] sm:$0x1]
    %v109 = vlaneseq
    %v110 = vshrl.u32 %v109, 7
    %v111 = vsub.s32 0, %v110
    %v112 = vrot.slane %v107, %v111
    %v122 = vunpack.c.l.b16 %v99
    %v123 = vunpack.c.l.b16 %v100
    %v124 = vunpack.c.l.b16 %v101
    %v125 = vunpack.c.l.b16 %v102
    %v126 = vunpack.c.l.b16 %v103
    %v127 = vunpack.c.l.b16 %v104
    %v128 = vunpack.c.l.b16 %v105
    %v129 = vunpack.c.l.b16 %v106
    %v130 = vpack.c.b16 %v123, %v122
    %v131 = vpack.c.b16 %v125, %v124
    %v132 = vpack.c.b16 %v127, %v126
    %v133 = vpack.c.b16 %v129, %v128
    %vm138 = vcmask 523264
    %v140 = vsel %vm138, %v98, 0
    %142 = vmatprep.subr.bf16.mxu0 0
    %143 = vmatpush1.bf16.msra.mxu0 0
    %144 = vmatprep.subr.bf16.mxu0 0
    %145 = vmatpush1.bf16.msra.mxu0 0
    %146 = vmatprep.subr.bf16.mxu0 0
    %147 = vmatpush1.bf16.msra.mxu0 0
    %148 = vmatprep.subr.bf16.mxu0 0
    %149 = vmatpush1.bf16.msra.mxu0 0
    %150 = vmatprep.subr.bf16.mxu0 0
    %151 = vmatpush1.bf16.msra.mxu0 %v133
    %152 = vmatprep.subr.bf16.mxu0 0
    %153 = vmatpush1.bf16.msra.mxu0 %v132
    %154 = vmatprep.subr.bf16.mxu0 0
    %155 = vmatpush1.bf16.msra.mxu0 %v131
    %156 = vmatprep.subr.bf16.mxu0 0
    %157 = vmatpush1.bf16.msra.mxu0 %v130
    %158 = vmatprep.subr.bf16.mxu0 0
    %159 = vmatpush2.bf16.msra.mxu0 0
    %160 = vmatprep.subr.bf16.mxu0 0
    %161 = vmatpush2.bf16.msra.mxu0 0
    %162 = vmatprep.subr.bf16.mxu0 0
    %163 = vmatpush2.bf16.msra.mxu0 0
    %164 = vmatprep.subr.bf16.mxu0 0
    %165 = vmatpush2.bf16.msra.mxu0 0
    %166 = vmatprep.subr.bf16.mxu0 0
    %167 = vmatpush2.bf16.msra.mxu0 0
    %168 = vmatprep.subr.bf16.mxu0 0
    %169 = vmatpush2.bf16.msra.mxu0 0
    %170 = vmatprep.subr.bf16.mxu0 0
    %171 = vmatpush2.bf16.msra.mxu0 0
    %172 = vmatprep.subr.bf16.mxu0 0
    %173 = vmatpush2.bf16.msra.mxu0 0
    %174 = vmatprep.mubr.bf16.mxu0 0
    %175 = vmatmul.mubr.bf16.gmra.mxu0 %v140
    %v176 = vpop.f32.mrf.mxu0
    %v177 = vadd.f32 %v112, %v176
    %v178 = vpop.f32.mrf.mxu0
    %v179 = vpop.f32.mrf.mxu0
    %v180 = vpop.f32.mrf.mxu0
    %181 = vdwg.mxu0
    %v182 = vmax.f32 %v177, 0.0
    %v183 = vpack.c.bf16 %v182, %v182
    %v184 = vld [vmem:[%s5] sm:$0xf]
    %v185 = vld [vmem:[%s5 + $0x4] sm:$0xf]
    %v186 = vld [vmem:[%s5 + $0x8] sm:$0xf]
    %v187 = vld [vmem:[%s5 + $0xc] sm:$0xf]
    %v188 = vld [vmem:[%s6] sm:$0x1]
    %v190 = vlaneseq
    %v191 = vshrl.u32 %v190, 7
    %v192 = vsub.s32 0, %v191
    %v193 = vrot.slane %v188, %v192
    %v199 = vunpack.c.l.b16 %v184
    %v200 = vunpack.c.l.b16 %v185
    %v201 = vunpack.c.l.b16 %v186
    %v202 = vunpack.c.l.b16 %v187
    %v203 = vpack.c.b16 %v200, %v199
    %v204 = vpack.c.b16 %v202, %v201
    %v208 = vsel %vm53, %v183, 0
    %210 = vmatprep.subr.bf16.mxu0 0
    %211 = vmatpush1.bf16.msra.mxu0 0
    %212 = vmatprep.subr.bf16.mxu0 0
    %213 = vmatpush1.bf16.msra.mxu0 0
    %214 = vmatprep.subr.bf16.mxu0 0
    %215 = vmatpush1.bf16.msra.mxu0 0
    %216 = vmatprep.subr.bf16.mxu0 0
    %217 = vmatpush1.bf16.msra.mxu0 0
    %218 = vmatprep.subr.bf16.mxu0 0
    %219 = vmatpush1.bf16.msra.mxu0 0
    %220 = vmatprep.subr.bf16.mxu0 0
    %221 = vmatpush1.bf16.msra.mxu0 0
    %222 = vmatprep.subr.bf16.mxu0 0
    %223 = vmatpush1.bf16.msra.mxu0 %v204
    %224 = vmatprep.subr.bf16.mxu0 0
    %225 = vmatpush1.bf16.msra.mxu0 %v203
    %226 = vmatprep.subr.bf16.mxu0 0
    %227 = vmatpush2.bf16.msra.mxu0 0
    %228 = vmatprep.subr.bf16.mxu0 0
    %229 = vmatpush2.bf16.msra.mxu0 0
    %230 = vmatprep.subr.bf16.mxu0 0
    %231 = vmatpush2.bf16.msra.mxu0 0
    %232 = vmatprep.subr.bf16.mxu0 0
    %233 = vmatpush2.bf16.msra.mxu0 0
    %234 = vmatprep.subr.bf16.mxu0 0
    %235 = vmatpush2.bf16.msra.mxu0 0
    %236 = vmatprep.subr.bf16.mxu0 0
    %237 = vmatpush2.bf16.msra.mxu0 0
    %238 = vmatprep.subr.bf16.mxu0 0
    %239 = vmatpush2.bf16.msra.mxu0 0
    %240 = vmatprep.subr.bf16.mxu0 0
    %241 = vmatpush2.bf16.msra.mxu0 0
    %242 = vmatprep.mubr.bf16.mxu0 0
    %243 = vmatmul.mubr.bf16.gmra.mxu0 %v208
    %v244 = vpop.f32.mrf.mxu0
    %v245 = vadd.f32 %v193, %v244
    %v246 = vpop.f32.mrf.mxu0
    %v247 = vpop.f32.mrf.mxu0
    %v248 = vpop.f32.mrf.mxu0
    %249 = vdwg.mxu0
    %vm250 = vcmask 130048
    %v251 = vsel %vm250, %v245, -inf
    %252 = vmax.xlane.f32.xlu0 %v251
    %v253 = vpop.xlane.xlu0 %252
    %v254 = vsub.f32 %v245, %v253
    %v255 = vmul.f32 %v254, 1.442695
    %v256 = vpow.pop %v255
    %v257 = vsel %vm250, %v256, 0.0
    %258 = vadd.xlane.f32.xlu0 %v257
    %v259 = vpop.xlane.xlu0 %258
    %v260 = vrcp.pop %v259
    %v261 = vmul.f32 %v256, %v260
    %262 = vst.msk [vmem:[#allocation2] sm:$0xff] %vm250, %v261
    // Predicated region
    $region30: #{neural_net_forward.1} parent=1 // pred_check
      _
    $region31: #{neural_net_forward.1} parent=1 // pred_check_branch
      %264 = sbr.rel (0) target = $region33
    $region32: #{neural_net_forward.1} parent=1 // pred_region
      %s266 = ssub.s32 128, 128
      %267 = vsyncadd [#allocation3], %s266
      %s269 = sshll.u32 [#allocation2], 4
      %s270 = int_to_ptr.vmem [resolvable:$true] %s269
      %272 = dma.vmem_to_hbm [thread:$0]  %s270, 128, %s7, [#allocation3]
    $region33: #{neural_net_forward.1} parent=1 // pred_fallthru
      _
    // Predicated region
    $region34: #{neural_net_forward.1} parent=1 // pred_check
      _
    $region35: #{neural_net_forward.1} parent=1 // pred_check_branch
      %274 = sbr.rel (0) target = $region37
    $region36: #{neural_net_forward.1} parent=1 // pred_region
      %275 = dma.done [#allocation3], 128
    $region37: #{neural_net_forward.1} parent=1 // pred_fallthru
      _
    %276 = vsyncpa [#allocation3], 1

</llo_original>
